<compile_context>
chip_gen: v6e
topology: v6e:2x2x1
jax: 0.10.0
libtpu: 0.0.40
codegen_flags: <defaults>
</compile_context>

<pallas_src>
import functools

import jax
import jax.numpy as jnp
from jax.experimental import pallas as pl
from jax.experimental.pallas import tpu as pltpu


def _conv1d_k3_kernel(x_ref, lh_ref, rh_ref, w_ref, b_ref, o_ref, *, L):
    # x_ref : (1, Cin, TL)    current length-tile of the input (NCL layout)
    # lh_ref: (1, 1, Cin, 1)  column just left of this tile (zero at seq start)
    # rh_ref: (1, 1, Cin, 1)  column just right of this tile (zero at seq end)
    # w_ref : (3, Cout, Cin)  taps, tap-major leading dim
    # b_ref : (Cout, 1)
    # o_ref : (1, Cout, TL)
    l = pl.program_id(1)
    TL = o_ref.shape[2]

    left_col = lh_ref[0, 0]                      # (Cin, 1)
    right_col = rh_ref[0, 0]                     # (Cin, 1)
    w0 = w_ref[0]                                # (Cout, Cin) tap for x[j-1]
    w1 = w_ref[1]                                # tap for x[j]
    w2 = w_ref[2]                                # tap for x[j+1]
    bias = b_ref[...].astype(jnp.float32)        # (Cout, 1)

    col = jax.lax.broadcasted_iota(jnp.int32, (1, TL), 1)

    def shifted(x_c):
        # x_m1[:, j] = x[:, j-1], x_p1[:, j] = x[:, j+1] (halo cols at the ends).
        if TL == 1:
            return left_col, right_col
        if TL % 128 == 0:
            # Lane rotate on the XLU + one-column fix-up (no copies).
            x_m1 = jnp.where(col == 0, left_col,
                             pltpu.roll(x_c, shift=1, axis=1))
            x_p1 = jnp.where(col == TL - 1, right_col,
                             pltpu.roll(x_c, shift=TL - 1, axis=1))
        else:
            # Small / non-128-multiple full-extent tiles: plain slice+concat.
            x_m1 = jnp.concatenate([left_col, x_c[:, :TL - 1]], axis=1)
            x_p1 = jnp.concatenate([x_c[:, 1:], right_col], axis=1)
        return x_m1, x_p1

    def compute(x_c):
        x_m1, x_p1 = shifted(x_c)
        acc = jnp.dot(w1, x_c, preferred_element_type=jnp.float32)
        acc = acc + jnp.dot(w0, x_m1, preferred_element_type=jnp.float32)
        acc = acc + jnp.dot(w2, x_p1, preferred_element_type=jnp.float32)
        o_ref[0] = (acc + bias).astype(o_ref.dtype)

    if L % TL == 0:
        # No tile is ever partial: fast path only, no masking anywhere.
        compute(x_ref[0])
    else:
        is_last = l == pl.num_programs(1) - 1

        @pl.when(jnp.logical_not(is_last))
        def _():
            compute(x_ref[0])

        @pl.when(is_last)
        def _():
            # Mask lanes past the true length L BEFORE building the shifted
            # views (keeps garbage OOB lanes out of valid outputs).
            gcol = l * TL + col
            x_c = jnp.where(gcol < L, x_ref[0], jnp.zeros((), x_ref.dtype))
            compute(x_c)


def _choose_tile(L, B, Cin, Cout, itemsize):
    """Pick the length-tile TL and a vmem limit, generation-aware."""
    try:
        vmem_cap = pltpu.get_tpu_info().vmem_capacity_bytes
    except Exception:  # off-TPU tracing / older jax: be conservative (v7x-like)
        vmem_cap = 64 * 1024 * 1024

    if vmem_cap >= 100 * 1024 * 1024:      # v5e / v6e: 128 MiB VMEM
        budget, vmem_limit = 28 * 1024 * 1024, 64 * 1024 * 1024
    else:                                  # v7x: 64 MiB VMEM per TensorCore
        budget, vmem_limit = 16 * 1024 * 1024, 44 * 1024 * 1024

    # Bytes per output column: double-buffered in/out blocks (input dtype),
    # two rolled temporaries + the (possibly masked) tile, and the f32 acc.
    per_col = itemsize * (2 * Cin + 2 * Cout + 3 * Cin) + 4 * Cout
    cap = max(128, min(4096, (budget // per_col) // 128 * 128))

    if L <= cap:
        if B == 1 and L >= 256:
            # Guarantee >= 2 grid points so both v7x TensorCores get work.
            tl = max(128, (pl.cdiv(L, 2) // 128) * 128)
            return tl, vmem_limit
        return L, vmem_limit
    return cap, vmem_limit


def conv_3_k(x, weight, bias, *, tile_l=None):
    """Conv_3_k.forward.

    x     : (B, Cin, L)      PyTorch NCL layout
    weight: (Cout, Cin, 3)   PyTorch Conv1d weight layout
    bias  : (Cout,)
    returns (B, Cout, L) in NCL layout.
    """
    B, Cin, L = x.shape
    Cout = weight.shape[0]
    itemsize = jnp.dtype(x.dtype).itemsize

    TL_auto, vmem_limit = _choose_tile(L, B, Cin, Cout, itemsize)
    if tile_l is not None and (tile_l == L or (tile_l % 128 == 0 and 0 < tile_l <= L)):
        TL = tile_l
    else:
        TL = TL_auto
    nL = pl.cdiv(L, TL)

    # Tiny side arrays with just the per-tile boundary columns (the padding=1
    # halo), so the kernel never re-reads wide halo blocks from HBM.
    zpad = jnp.zeros((B, Cin, 1), x.dtype)
    if nL > 1:
        lcols = jnp.concatenate([zpad, x[:, :, TL - 1:L - 1:TL]], axis=2)  # (B,Cin,nL)
        rcols = jnp.concatenate([x[:, :, TL::TL], zpad], axis=2)           # (B,Cin,nL)
    else:
        lcols = zpad
        rcols = zpad
    lh = jnp.transpose(lcols, (0, 2, 1))[..., None]   # (B, nL, Cin, 1)
    rh = jnp.transpose(rcols, (0, 2, 1))[..., None]   # (B, nL, Cin, 1)

    # (Cout, Cin, 3) -> (3, Cout, Cin): tap-major leading dim, one-off transform.
    w3 = jnp.transpose(weight, (2, 0, 1))
    b2 = bias.reshape(Cout, 1)

    kernel = functools.partial(_conv1d_k3_kernel, L=L)

    cost = pl.CostEstimate(
        flops=2 * 3 * Cin * Cout * L * B,
        transcendentals=0,
        bytes_accessed=(Cin + Cout) * L * B * itemsize
        + 2 * B * nL * Cin * itemsize + 3 * Cin * Cout * itemsize,
    )

    return pl.pallas_call(
        kernel,
        out_shape=jax.ShapeDtypeStruct((B, Cout, L), x.dtype),
        grid_spec=pltpu.PrefetchScalarGridSpec(
            num_scalar_prefetch=0,
            grid=(B, nL),
            in_specs=[
                # Current length-tile (lane-dense on L).
                pl.BlockSpec((1, Cin, TL), lambda b, l: (b, 0, l)),
                # Left / right boundary columns for this tile.
                pl.BlockSpec((1, 1, Cin, 1), lambda b, l: (b, l, 0, 0)),
                pl.BlockSpec((1, 1, Cin, 1), lambda b, l: (b, l, 0, 0)),
                # Weights / bias: whole (tiny) arrays, resident across the grid.
                pl.BlockSpec((3, Cout, Cin), lambda b, l: (0, 0, 0)),
                pl.BlockSpec((Cout, 1), lambda b, l: (0, 0)),
            ],
            out_specs=pl.BlockSpec((1, Cout, TL), lambda b, l: (b, 0, l)),
        ),
        compiler_params=pltpu.CompilerParams(
            dimension_semantics=("parallel", "parallel"),
            vmem_limit_bytes=vmem_limit,
        ),
        cost_estimate=cost,
    )(x, lh, rh, w3, b2)


def _reference(x, weight, bias):
    return jax.lax.conv_general_dilated(
        x, weight, window_strides=(1,), padding=((1, 1),),
        dimension_numbers=("NCH", "OIH", "NCH")) + bias[None, :, None]


if __name__ == "__main__":
    key = jax.random.PRNGKey(0)
    kx, kw, kb, kx2, kw2, kb2 = jax.random.split(key, 6)

    # Test 1: tiny demo shapes (single full-extent L tile, concat path).
    B, Cin, Cout, L = 2, 4, 8, 16
    x = jax.random.normal(kx, (B, Cin, L), dtype=jnp.float32)
    weight = jax.random.normal(kw, (Cout, Cin, 3), dtype=jnp.float32) * 0.1
    bias = jax.random.normal(kb, (Cout,), dtype=jnp.float32) * 0.1

    out = jax.block_until_ready(conv_3_k(x, weight, bias))
    ref = _reference(x, weight, bias)
    assert out.shape == (B, Cout, L)
    assert jnp.allclose(out, ref, atol=1e-4, rtol=1e-4)

    # Test 2: tiled-L path (roll-based shifts, cross-tile boundary columns,
    # pl.when-gated partial last tile).
    B2, Cin2, Cout2, L2 = 2, 8, 16, 300
    x2 = jax.random.normal(kx2, (B2, Cin2, L2), dtype=jnp.float32)
    w2 = jax.random.normal(kw2, (Cout2, Cin2, 3), dtype=jnp.float32) * 0.1
    b2 = jax.random.normal(kb2, (Cout2,), dtype=jnp.float32) * 0.1

    out2 = jax.block_until_ready(conv_3_k(x2, w2, b2, tile_l=128))
    ref2 = _reference(x2, w2, b2)
    assert out2.shape == (B2, Cout2, L2)
    assert jnp.allclose(out2, ref2, atol=1e-4, rtol=1e-4)

    print("KERNEL_OK")
</pallas_src>

<mosaic_0001>
module attributes {stable_mosaic.version = 11 : i64} {
  func.func @_conv1d_k3_kernel(%arg0: i32, %arg1: i32, %arg2: memref<1x4x16xf32, #tpu.memory_space<vmem>>, %arg3: memref<1x1x4x1xf32, #tpu.memory_space<vmem>>, %arg4: memref<1x1x4x1xf32, #tpu.memory_space<vmem>>, %arg5: memref<3x8x4xf32, #tpu.memory_space<vmem>>, %arg6: memref<8x1xf32, #tpu.memory_space<vmem>>, %arg7: memref<1x8x16xf32, #tpu.memory_space<vmem>>) attributes {dimension_semantics = [#tpu.dimension_semantics<parallel>, #tpu.dimension_semantics<parallel>], iteration_bounds = array<i64: 2, 1>, scalar_prefetch = 0 : i64, scratch_operands = 0 : i64, tpu.core_type = #tpu.core_type<tc>, window_params = [{transform_indices = @transform_0, window_bounds = array<i64: 1, 4, 16>}, {transform_indices = @transform_1, window_bounds = array<i64: 1, 1, 4, 1>}, {transform_indices = @transform_2, window_bounds = array<i64: 1, 1, 4, 1>}, {pipeline_mode = #tpu.pipeline_mode<synchronous>, transform_indices = @transform_3, window_bounds = array<i64: 3, 8, 4>}, {pipeline_mode = #tpu.pipeline_mode<synchronous>, transform_indices = @transform_4, window_bounds = array<i64: 8, 1>}, {transform_indices = @transform_5, window_bounds = array<i64: 1, 8, 16>}]} {
    %c0 = arith.constant 0 : index
    %c0_0 = arith.constant 0 : index
    %c0_1 = arith.constant 0 : index
    %c0_2 = arith.constant 0 : index
    %0 = vector.load %arg3[%c0, %c0_0, %c0_1, %c0_2] : memref<1x1x4x1xf32, #tpu.memory_space<vmem>>, vector<1x1x4x1xf32>
    %1 = vector.shape_cast %0 : vector<1x1x4x1xf32> to vector<4x1xf32>
    %c0_3 = arith.constant 0 : index
    %c0_4 = arith.constant 0 : index
    %c0_5 = arith.constant 0 : index
    %c0_6 = arith.constant 0 : index
    %2 = vector.load %arg4[%c0_3, %c0_4, %c0_5, %c0_6] : memref<1x1x4x1xf32, #tpu.memory_space<vmem>>, vector<1x1x4x1xf32>
    %3 = vector.shape_cast %2 : vector<1x1x4x1xf32> to vector<4x1xf32>
    %c0_7 = arith.constant 0 : index
    %c0_8 = arith.constant 0 : index
    %c0_9 = arith.constant 0 : index
    %4 = vector.load %arg5[%c0_7, %c0_8, %c0_9] : memref<3x8x4xf32, #tpu.memory_space<vmem>>, vector<1x8x4xf32>
    %5 = vector.shape_cast %4 : vector<1x8x4xf32> to vector<8x4xf32>
    %c1 = arith.constant 1 : index
    %c0_10 = arith.constant 0 : index
    %c0_11 = arith.constant 0 : index
    %6 = vector.load %arg5[%c1, %c0_10, %c0_11] : memref<3x8x4xf32, #tpu.memory_space<vmem>>, vector<1x8x4xf32>
    %7 = vector.shape_cast %6 : vector<1x8x4xf32> to vector<8x4xf32>
    %c2 = arith.constant 2 : index
    %c0_12 = arith.constant 0 : index
    %c0_13 = arith.constant 0 : index
    %8 = vector.load %arg5[%c2, %c0_12, %c0_13] : memref<3x8x4xf32, #tpu.memory_space<vmem>>, vector<1x8x4xf32>
    %9 = vector.shape_cast %8 : vector<1x8x4xf32> to vector<8x4xf32>
    %c0_14 = arith.constant 0 : index
    %c0_15 = arith.constant 0 : index
    %10 = vector.load %arg6[%c0_14, %c0_15] : memref<8x1xf32, #tpu.memory_space<vmem>>, vector<8x1xf32>
    %c0_16 = arith.constant 0 : index
    %c0_17 = arith.constant 0 : index
    %c0_18 = arith.constant 0 : index
    %11 = vector.load %arg2[%c0_16, %c0_17, %c0_18] : memref<1x4x16xf32, #tpu.memory_space<vmem>>, vector<1x4x16xf32>
    %12 = vector.shape_cast %11 : vector<1x4x16xf32> to vector<4x16xf32>
    %13 = vector.extract_strided_slice %12 {offsets = [0, 0], sizes = [4, 15], strides = [1, 1]} : vector<4x16xf32> to vector<4x15xf32>
    %14 = tpu.concatenate %1, %13 in 1 : vector<4x1xf32>, vector<4x15xf32> -> vector<4x16xf32>
    %15 = vector.extract_strided_slice %12 {offsets = [0, 1], sizes = [4, 15], strides = [1, 1]} : vector<4x16xf32> to vector<4x15xf32>
    %16 = tpu.concatenate %15, %3 in 1 : vector<4x15xf32>, vector<4x1xf32> -> vector<4x16xf32>
    %cst = arith.constant dense<0.000000e+00> : vector<8x16xf32>
    %17 = tpu.matmul %7, %12, %cst {dimension_numbers = #tpu.dot_dimension_numbers<[1], [0], [0], [1], [0, 0, 1, 1], [], []>} : vector<8x4xf32>, vector<4x16xf32>, vector<8x16xf32> -> vector<8x16xf32>
    %cst_19 = arith.constant dense<0.000000e+00> : vector<8x16xf32>
    %18 = tpu.matmul %5, %14, %cst_19 {dimension_numbers = #tpu.dot_dimension_numbers<[1], [0], [0], [1], [0, 0, 1, 1], [], []>} : vector<8x4xf32>, vector<4x16xf32>, vector<8x16xf32> -> vector<8x16xf32>
    %19 = arith.addf %17, %18 : vector<8x16xf32>
    %cst_20 = arith.constant dense<0.000000e+00> : vector<8x16xf32>
    %20 = tpu.matmul %9, %16, %cst_20 {dimension_numbers = #tpu.dot_dimension_numbers<[1], [0], [0], [1], [0, 0, 1, 1], [], []>} : vector<8x4xf32>, vector<4x16xf32>, vector<8x16xf32> -> vector<8x16xf32>
    %21 = arith.addf %19, %20 : vector<8x16xf32>
    %22 = vector.broadcast %10 : vector<8x1xf32> to vector<8x16xf32>
    %23 = arith.addf %21, %22 : vector<8x16xf32>
    %c0_21 = arith.constant 0 : index
    %c0_22 = arith.constant 0 : index
    %c0_23 = arith.constant 0 : index
    %24 = vector.load %arg7[%c0_21, %c0_22, %c0_23] : memref<1x8x16xf32, #tpu.memory_space<vmem>>, vector<1x8x16xf32>
    %25 = vector.shape_cast %24 : vector<1x8x16xf32> to vector<8x16xf32>
    %26 = vector.shape_cast %23 : vector<8x16xf32> to vector<1x8x16xf32>
    tpu.vector_store %arg7[%c0_21, %c0_22, %c0_23], %26 {strides = array<i32>} : memref<1x8x16xf32, #tpu.memory_space<vmem>>, vector<1x8x16xf32>,
    return
  }
  func.func @transform_0(%arg0: i32, %arg1: i32) -> (i32, i32, i32) {
    %c0_i32 = arith.constant 0 : i32
    %c0_i32_0 = arith.constant 0 : i32
    return %arg0, %c0_i32, %arg1 : i32, i32, i32
  }
  func.func @transform_1(%arg0: i32, %arg1: i32) -> (i32, i32, i32, i32) {
    %c0_i32 = arith.constant 0 : i32
    %c0_i32_0 = arith.constant 0 : i32
    %c0_i32_1 = arith.constant 0 : i32
    return %arg0, %arg1, %c0_i32, %c0_i32_0 : i32, i32, i32, i32
  }
  func.func @transform_2(%arg0: i32, %arg1: i32) -> (i32, i32, i32, i32) {
    %c0_i32 = arith.constant 0 : i32
    %c0_i32_0 = arith.constant 0 : i32
    %c0_i32_1 = arith.constant 0 : i32
    return %arg0, %arg1, %c0_i32, %c0_i32_0 : i32, i32, i32, i32
  }
  func.func @transform_3(%arg0: i32, %arg1: i32) -> (i32, i32, i32) {
    %c0_i32 = arith.constant 0 : i32
    %c0_i32_0 = arith.constant 0 : i32
    %c0_i32_1 = arith.constant 0 : i32
    %c0_i32_2 = arith.constant 0 : i32
    return %c0_i32, %c0_i32_0, %c0_i32_1 : i32, i32, i32
  }
  func.func @transform_4(%arg0: i32, %arg1: i32) -> (i32, i32) {
    %c0_i32 = arith.constant 0 : i32
    %c0_i32_0 = arith.constant 0 : i32
    %c0_i32_1 = arith.constant 0 : i32
    return %c0_i32, %c0_i32_0 : i32, i32
  }
  func.func @transform_5(%arg0: i32, %arg1: i32) -> (i32, i32, i32) {
    %c0_i32 = arith.constant 0 : i32
    %c0_i32_0 = arith.constant 0 : i32
    return %arg0, %c0_i32, %arg1 : i32, i32, i32
  }
}

</mosaic_0001>

<llo_original>
// kernel: tpu_custom_call.1
$region0: #{tpu_custom_call.1}
  #allocation0 [shape = 'u32[]', space=smem, size = 0x4, offset = 0x4, fixed_abs, tag = 'smem constant byte address 0x4 - core index']
  #allocation1 [shape = 'u32[144,128]{1,0:T(1,128)}', space=vmem, size = 0x12000, scoped, tag = 'internal scratch']
  %s0 = inlined_call_operand.vmem [shape: f32[2,4,16], index: 0, kind: input, shape index: {}]
  %s1 = inlined_call_operand.vmem [shape: f32[2,1,4,1], index: 1, kind: input, shape index: {}]
  %s2 = inlined_call_operand.vmem [shape: f32[2,1,4,1], index: 2, kind: input, shape index: {}]
  %s3 = inlined_call_operand.vmem [shape: f32[3,8,4], index: 3, kind: input, shape index: {}]
  %s4 = inlined_call_operand.vmem [shape: f32[8,1], index: 4, kind: input, shape index: {}]
  %s5 = inlined_call_operand.hbm [shape: f32[2,8,16], index: 5, kind: output, shape index: {}]
  %s6 = sld [smem:[#allocation0]]
  $region53: #{tpu_custom_call.1} parent=0
    _
  %s8 = ssub.s32 1, %s6
  %s9 = scalar_select 0, %s8, %s6
  $region1: #{tpu_custom_call.1} parent=0
    #allocation2 [shape = 'u8[8192]{0}', space=vmem, size = 0x2000, scoped, tag = 'output window, operand 0']
    #allocation3 [shape = 's32[2]{0}', space=sflag, size = 0x8, scoped, tag = 'scoped memory for tpu_custom_call.1']
    %10 = vsyncpa [#allocation3], 0
    %s11 = scalar_lea.sflag [#allocation3], 1
    %12 = vsyncpa %s11, 0
    loop: start=0, step=1, limit=4
    $region2: #{tpu_custom_call.1} parent=1 // loop_pre_header
      _
    $region3: #{tpu_custom_call.1} parent=1 // loop_header
      %s14 = sphi 0, %s18
      %p15 = scmp.ge.s32.totalorder %s14, 4
      %s21 = sphi 0, %s33
      %s22 = sphi 0, %s29
      %s23 = sphi 0, %s21
      %s24 = sphi 0, %s22
      %s25 = sphi 0, %s23
      %s26 = sphi 0, %s24
      %s38 = sphi 0, %s40
      %s41 = sphi 0, %s38
      %s42 = sphi 0, %s41
      %s58 = sphi 0, %s42
      %s66 = sphi 0, %s68
      %s69 = sphi 0, %s66
      %s70 = sphi 0, %s69
      %s86 = sphi 0, %s70
      %s94 = sphi 0, %s96
      %s97 = sphi 0, %s94
      %s98 = sphi 0, %s97
      %s114 = sphi 0, %s98
      %s118 = sphi 0, %s118
      %s120 = sphi 0, %s118
      %s121 = sphi 0, %s120
      %s135 = sphi 0, %s121
      %s139 = sphi 0, %s139
      %s141 = sphi 0, %s139
      %s142 = sphi 0, %s141
      %s156 = sphi 0, %s142
      %s164 = sphi 0, %s166
      %s167 = sphi 0, %s164
      %s168 = sphi 0, %s167
      %s184 = sphi 0, %s168
    $region4: #{tpu_custom_call.1} parent=1 // loop_header_branch
      %17 = sbr.rel (%p15) target = $region8
    $region5: #{tpu_custom_call.1} parent=1 // loop_body
      %s19 = ssub.s32 %s14, 1
      %s20 = ssub.s32 %s14, 2
      %s27 = sadd.s32 1, %s22
      %p28 = scmp.ge.s32.totalorder %s27, 1
      %s29 = scalar_select %p28, 0, %s27
      %s30 = sadd.s32 1, %s21
      %s31 = scalar_select %p28, %s30, %s21
      %p32 = scmp.ge.s32.totalorder %s31, 2
      %s33 = scalar_select %p32, 0, %s31
      %s34 = ssub.s32 %s21, %s33
      %s35 = ssub.s32 %s22, %s29
      %s36 = sor.u32 %s34, %s35
      %p37 = scmp.eq.s32.totalorder %s36, 0
      %s39 = sadd.s32 %s38, 1
      %s40 = scalar_select %p37, %s38, %s39
      %p43 = pneg %p37
      %p44 = scmp.eq.s32.totalorder %s14, 1
      %p45 = por %p43, %p44
      %p46 = scmp.ne.s32.totalorder %s38, %s41
      %p47 = scmp.eq.s32.totalorder %s14, 0
      %p48 = por %p46, %p47
      %p49 = scmp.ne.s32.totalorder %s38, %s41
      %p50 = scmp.eq.s32.totalorder %s19, 1
      %p51 = por %p49, %p50
      %p52 = scmp.ne.s32.totalorder %s41, %s42
      %p53 = scmp.eq.s32.totalorder %s19, 0
      %p54 = por %p52, %p53
      %p55 = scmp.ne.s32.totalorder %s41, %s42
      %p56 = scmp.eq.s32.totalorder %s20, 1
      %p57 = por %p55, %p56
      %p59 = scmp.ne.s32.totalorder %s42, %s58
      %p60 = scmp.eq.s32.totalorder %s20, 0
      %p61 = por %p59, %p60
      %s62 = ssub.s32 %s21, %s33
      %s63 = ssub.s32 %s22, %s29
      %s64 = sor.u32 %s62, %s63
      %p65 = scmp.eq.s32.totalorder %s64, 0
      %s67 = sadd.s32 %s66, 1
      %s68 = scalar_select %p65, %s66, %s67
      %p71 = pneg %p65
      %p72 = scmp.eq.s32.totalorder %s14, 1
      %p73 = por %p71, %p72
      %p74 = scmp.ne.s32.totalorder %s66, %s69
      %p75 = scmp.eq.s32.totalorder %s14, 0
      %p76 = por %p74, %p75
      %p77 = scmp.ne.s32.totalorder %s66, %s69
      %p78 = scmp.eq.s32.totalorder %s19, 1
      %p79 = por %p77, %p78
      %p80 = scmp.ne.s32.totalorder %s69, %s70
      %p81 = scmp.eq.s32.totalorder %s19, 0
      %p82 = por %p80, %p81
      %p83 = scmp.ne.s32.totalorder %s69, %s70
      %p84 = scmp.eq.s32.totalorder %s20, 1
      %p85 = por %p83, %p84
      %p87 = scmp.ne.s32.totalorder %s70, %s86
      %p88 = scmp.eq.s32.totalorder %s20, 0
      %p89 = por %p87, %p88
      %s90 = ssub.s32 %s21, %s33
      %s91 = ssub.s32 %s22, %s29
      %s92 = sor.u32 %s90, %s91
      %p93 = scmp.eq.s32.totalorder %s92, 0
      %s95 = sadd.s32 %s94, 1
      %s96 = scalar_select %p93, %s94, %s95
      %p99 = pneg %p93
      %p100 = scmp.eq.s32.totalorder %s14, 1
      %p101 = por %p99, %p100
      %p102 = scmp.ne.s32.totalorder %s94, %s97
      %p103 = scmp.eq.s32.totalorder %s14, 0
      %p104 = por %p102, %p103
      %p105 = scmp.ne.s32.totalorder %s94, %s97
      %p106 = scmp.eq.s32.totalorder %s19, 1
      %p107 = por %p105, %p106
      %p108 = scmp.ne.s32.totalorder %s97, %s98
      %p109 = scmp.eq.s32.totalorder %s19, 0
      %p110 = por %p108, %p109
      %p111 = scmp.ne.s32.totalorder %s97, %s98
      %p112 = scmp.eq.s32.totalorder %s20, 1
      %p113 = por %p111, %p112
      %p115 = scmp.ne.s32.totalorder %s98, %s114
      %p116 = scmp.eq.s32.totalorder %s20, 0
      %p117 = por %p115, %p116
      %s119 = sadd.s32 %s118, 1
      %p122 = scmp.eq.s32.totalorder %s14, 1
      %p123 = scmp.ne.s32.totalorder %s118, %s120
      %p124 = scmp.eq.s32.totalorder %s14, 0
      %p125 = por %p123, %p124
      %p126 = scmp.ne.s32.totalorder %s118, %s120
      %p127 = scmp.eq.s32.totalorder %s19, 1
      %p128 = por %p126, %p127
      %p129 = scmp.ne.s32.totalorder %s120, %s121
      %p130 = scmp.eq.s32.totalorder %s19, 0
      %p131 = por %p129, %p130
      %p132 = scmp.ne.s32.totalorder %s120, %s121
      %p133 = scmp.eq.s32.totalorder %s20, 1
      %p134 = por %p132, %p133
      %p136 = scmp.ne.s32.totalorder %s121, %s135
      %p137 = scmp.eq.s32.totalorder %s20, 0
      %p138 = por %p136, %p137
      %s140 = sadd.s32 %s139, 1
      %p143 = scmp.eq.s32.totalorder %s14, 1
      %p144 = scmp.ne.s32.totalorder %s139, %s141
      %p145 = scmp.eq.s32.totalorder %s14, 0
      %p146 = por %p144, %p145
      %p147 = scmp.ne.s32.totalorder %s139, %s141
      %p148 = scmp.eq.s32.totalorder %s19, 1
      %p149 = por %p147, %p148
      %p150 = scmp.ne.s32.totalorder %s141, %s142
      %p151 = scmp.eq.s32.totalorder %s19, 0
      %p152 = por %p150, %p151
      %p153 = scmp.ne.s32.totalorder %s141, %s142
      %p154 = scmp.eq.s32.totalorder %s20, 1
      %p155 = por %p153, %p154
      %p157 = scmp.ne.s32.totalorder %s142, %s156
      %p158 = scmp.eq.s32.totalorder %s20, 0
      %p159 = por %p157, %p158
      %s160 = ssub.s32 %s21, %s33
      %s161 = ssub.s32 %s22, %s29
      %s162 = sor.u32 %s160, %s161
      %p163 = scmp.eq.s32.totalorder %s162, 0
      %s165 = sadd.s32 %s164, 1
      %s166 = scalar_select %p163, %s164, %s165
      %p169 = pneg %p163
      %p170 = scmp.eq.s32.totalorder %s14, 1
      %p171 = por %p169, %p170
      %p172 = scmp.ne.s32.totalorder %s164, %s167
      %p173 = scmp.eq.s32.totalorder %s14, 0
      %p174 = por %p172, %p173
      %p175 = scmp.ne.s32.totalorder %s164, %s167
      %p176 = scmp.eq.s32.totalorder %s19, 1
      %p177 = por %p175, %p176
      %p178 = scmp.ne.s32.totalorder %s167, %s168
      %p179 = scmp.eq.s32.totalorder %s19, 0
      %p180 = por %p178, %p179
      %p181 = scmp.ne.s32.totalorder %s167, %s168
      %p182 = scmp.eq.s32.totalorder %s20, 1
      %p183 = por %p181, %p182
      %p185 = scmp.ne.s32.totalorder %s168, %s184
      %p186 = scmp.eq.s32.totalorder %s20, 0
      %p187 = por %p185, %p186
      %p188 = scmp.le.s32.totalorder 1, %s14
      %p189 = scmp.lt.s32.totalorder %s14, 3
      %p190 = pnand %p188, %p189
      %p191 = pneg %p190
      // Predicated region
      $region9: #{tpu_custom_call.1} parent=5 // pred_check
        _
      $region10: #{tpu_custom_call.1} parent=5 // pred_check_branch
        %193 = sbr.rel (%p190) target = $region12
      $region11: #{tpu_custom_call.1} parent=5 // pred_region
        %s194 = ssub.s32 %s14, 1
        // Predicated region
        $region13: #{tpu_custom_call.1} parent=11 // pred_check
          %p195 = pneg %p131
        $region14: #{tpu_custom_call.1} parent=11 // pred_check_branch
          %197 = sbr.rel (%p195) target = $region16
        $region15: #{tpu_custom_call.1} parent=11 // pred_region
          _
        $region16: #{tpu_custom_call.1} parent=11 // pred_fallthru
          _
        // Predicated region
        $region17: #{tpu_custom_call.1} parent=11 // pred_check
          %p198 = pneg %p152
        $region18: #{tpu_custom_call.1} parent=11 // pred_check_branch
          %200 = sbr.rel (%p198) target = $region20
        $region19: #{tpu_custom_call.1} parent=11 // pred_region
          _
        $region20: #{tpu_custom_call.1} parent=11 // pred_fallthru
          _
      $region12: #{tpu_custom_call.1} parent=5 // pred_fallthru
        _
      %p201 = scmp.lt.s32.totalorder %s14, 2
      // Predicated region
      $region21: #{tpu_custom_call.1} parent=5 // pred_check
        %p202 = pneg %p201
      $region22: #{tpu_custom_call.1} parent=5 // pred_check_branch
        %204 = sbr.rel (%p202) target = $region24
      $region23: #{tpu_custom_call.1} parent=5 // pred_region
        // Predicated region
        $region25: #{tpu_custom_call.1} parent=23 // pred_check
          %p205 = pneg %p48
        $region26: #{tpu_custom_call.1} parent=23 // pred_check_branch
          %207 = sbr.rel (%p205) target = $region28
        $region27: #{tpu_custom_call.1} parent=23 // pred_region
          %p208 = scmp.lt.s32.totalorder %s21, 1
          %s209 = scalar_select %p208, %s21, 1
          %p210 = scmp.lt.s32.totalorder %s22, 0
          %s211 = scalar_select %p210, %s22, 0
          %s212 = sadd.s32 %s211, %s209
          %s213 = smul.addr %s212, 4
          %s214 = scalar_lea.vmem %s0, %s213
        $region28: #{tpu_custom_call.1} parent=23 // pred_fallthru
          _
        // Predicated region
        $region29: #{tpu_custom_call.1} parent=23 // pred_check
          %p215 = pneg %p76
        $region30: #{tpu_custom_call.1} parent=23 // pred_check_branch
          %217 = sbr.rel (%p215) target = $region32
        $region31: #{tpu_custom_call.1} parent=23 // pred_region
          %p218 = scmp.lt.s32.totalorder %s21, 1
          %s219 = scalar_select %p218, %s21, 1
          %p220 = scmp.lt.s32.totalorder %s22, 0
          %s221 = scalar_select %p220, %s22, 0
          %s222 = sadd.s32 %s221, %s219
          %s223 = smul.addr %s222, 4
          %s224 = scalar_lea.vmem %s1, %s223
        $region32: #{tpu_custom_call.1} parent=23 // pred_fallthru
          _
        // Predicated region
        $region33: #{tpu_custom_call.1} parent=23 // pred_check
          %p225 = pneg %p104
        $region34: #{tpu_custom_call.1} parent=23 // pred_check_branch
          %227 = sbr.rel (%p225) target = $region36
        $region35: #{tpu_custom_call.1} parent=23 // pred_region
          %p228 = scmp.lt.s32.totalorder %s21, 1
          %s229 = scalar_select %p228, %s21, 1
          %p230 = scmp.lt.s32.totalorder %s22, 0
          %s231 = scalar_select %p230, %s22, 0
          %s232 = sadd.s32 %s231, %s229
          %s233 = smul.addr %s232, 4
          %s234 = scalar_lea.vmem %s2, %s233
        $region36: #{tpu_custom_call.1} parent=23 // pred_fallthru
          _
      $region24: #{tpu_custom_call.1} parent=5 // pred_fallthru
        _
      %p235 = scmp.le.s32.totalorder 1, %s14
      %p236 = scmp.lt.s32.totalorder %s14, 3
      %p237 = pnand %p235, %p236
      %p238 = pneg %p237
      // Predicated region
      $region37: #{tpu_custom_call.1} parent=5 // pred_check
        _
      $region38: #{tpu_custom_call.1} parent=5 // pred_check_branch
        %240 = sbr.rel (%p237) target = $region40
      $region39: #{tpu_custom_call.1} parent=5 // pred_region
        %s241 = ssub.s32 %s14, 1
        %p242 = scmp.lt.s32.totalorder %s23, 1
        %s243 = scalar_select %p242, %s23, 1
        %p244 = scmp.lt.s32.totalorder %s24, 0
        %s245 = scalar_select %p244, %s24, 0
        %s246 = sadd.s32 %s245, %s243
        %s247 = smul.addr %s246, 4
        %s248 = scalar_lea.vmem %s0, %s247
        %p249 = pneg %p54
        %p250 = pneg %p51
        %p251 = scmp.lt.s32.totalorder %s23, 1
        %s252 = scalar_select %p251, %s23, 1
        %p253 = scmp.lt.s32.totalorder %s24, 0
        %s254 = scalar_select %p253, %s24, 0
        %s255 = sadd.s32 %s254, %s252
        %s256 = smul.addr %s255, 4
        %s257 = scalar_lea.vmem %s1, %s256
        %p258 = pneg %p82
        %p259 = pneg %p79
        %p260 = scmp.lt.s32.totalorder %s23, 1
        %s261 = scalar_select %p260, %s23, 1
        %p262 = scmp.lt.s32.totalorder %s24, 0
        %s263 = scalar_select %p262, %s24, 0
        %s264 = sadd.s32 %s263, %s261
        %s265 = smul.addr %s264, 4
        %s266 = scalar_lea.vmem %s2, %s265
        %p267 = pneg %p110
        %p268 = pneg %p107
        %p269 = pneg %p131
        %p270 = pneg %p128
        %p271 = pneg %p152
        %p272 = pneg %p149
        %p273 = pneg %p180
        %p274 = pneg %p177
        %s275 = sand.u32 %s167, 1
        %s276 = scalar_lea.sflag [#allocation3], %s275
        %s277 = sand.u32 %s167, 1
        %s278 = smul.addr %s277, 8
        %s279 = scalar_lea.vmem [#allocation2], %s278
        %p280 = scmp.lt.s32.totalorder %s23, 1
        %s281 = scalar_select %p280, %s23, 1
        %p282 = scmp.lt.s32.totalorder %s24, 0
        %s283 = scalar_select %p282, %s24, 0
        %s284 = sadd.s32 %s283, %s281
        %s285 = smul.addr %s284, 4
        %s286 = scalar_lea.vmem %s0, %s285
        %p287 = scmp.lt.s32.totalorder %s23, 1
        %s288 = scalar_select %p287, %s23, 1
        %p289 = scmp.lt.s32.totalorder %s24, 0
        %s290 = scalar_select %p289, %s24, 0
        %s291 = sadd.s32 %s290, %s288
        %s292 = smul.addr %s291, 4
        %s293 = scalar_lea.vmem %s1, %s292
        %p294 = scmp.lt.s32.totalorder %s23, 1
        %s295 = scalar_select %p294, %s23, 1
        %p296 = scmp.lt.s32.totalorder %s24, 0
        %s297 = scalar_select %p296, %s24, 0
        %s298 = sadd.s32 %s297, %s295
        %s299 = smul.addr %s298, 4
        %s300 = scalar_lea.vmem %s2, %s299
        %v301 = vld [vmem:[%s293] sm:$0xf]
        %v302 = vld [vmem:[%s300] sm:$0xf]
        %v303 = vld [vmem:[%s3] sm:$0xff]
        %s304 = scalar_lea.vmem %s3, 8
        %v305 = vld [vmem:[%s304] sm:$0xff]
        %s306 = scalar_lea.vmem %s3, 16
        %v307 = vld [vmem:[%s306] sm:$0xff]
        %v308 = vld [vmem:[%s4] sm:$0xff]
        %v309 = vld [vmem:[%s286] sm:$0xf]
        %311 = vrot.lane.b32.xlu0 %v309, 1
        %v312 = vpop.permute.xlu0 %311
        %vm314 = vcmask 7168
        %v315 = vsel %vm314, %v301, %v312
        %316 = vrot.lane.b32.xlu0 %v309, 127
        %v317 = vpop.permute.xlu0 %316
        %320 = vrot.lane.b32.xlu0 %v302, 15
        %v321 = vpop.permute.xlu0 %320
        %vm323 = vcmask 121856
        %v324 = vsel %vm323, %v317, %v321
        %vm325 = vcmask 31744
        %v327 = vsel %vm325, %v303, 0
        %vm329 = vcmask 1043456
        %v331 = vsel %vm329, %v315, 0
        %333 = vmatprep.subr.mxu0 0.0
        %334 = vmatpush1.msra.mxu0 0.0
        %335 = vmatprep.subr.mxu0 0.0
        %336 = vmatpush1.msra.mxu0 0.0
        %337 = vmatprep.subr.mxu0 0.0
        %338 = vmatpush1.msra.mxu0 0.0
        %339 = vmatprep.subr.mxu0 0.0
        %340 = vmatpush1.msra.mxu0 0.0
        %341 = vmatprep.subr.mxu0 0.0
        %342 = vmatpush1.msra.mxu0 0.0
        %343 = vmatprep.subr.mxu0 0.0
        %344 = vmatpush1.msra.mxu0 0.0
        %345 = vmatprep.subr.mxu0 0.0
        %346 = vmatpush1.msra.mxu0 0.0
        %347 = vmatprep.subr.mxu0 0.0
        %348 = vmatpush1.msra.mxu0 0.0
        %349 = vmatprep.subr.mxu0 0.0
        %350 = vmatpush1.msra.mxu0 0.0
        %351 = vmatprep.subr.mxu0 0.0
        %352 = vmatpush1.msra.mxu0 0.0
        %353 = vmatprep.subr.mxu0 0.0
        %354 = vmatpush1.msra.mxu0 0.0
        %355 = vmatprep.subr.mxu0 0.0
        %356 = vmatpush1.msra.mxu0 0.0
        %357 = vmatprep.subr.mxu0 0.0
        %358 = vmatpush1.msra.mxu0 0.0
        %359 = vmatprep.subr.mxu0 0.0
        %360 = vmatpush1.msra.mxu0 0.0
        %361 = vmatprep.subr.mxu0 0.0
        %362 = vmatpush1.msra.mxu0 0.0
        %363 = vmatprep.subr.mxu0 0.0
        %364 = vmatpush1.msra.mxu0 %v331
        %365 = vmatprep.subr.mxu0 0.0
        %366 = vmatpush2.msra.mxu0 0.0
        %367 = vmatprep.subr.mxu0 0.0
        %368 = vmatpush2.msra.mxu0 0.0
        %369 = vmatprep.subr.mxu0 0.0
        %370 = vmatpush2.msra.mxu0 0.0
        %371 = vmatprep.subr.mxu0 0.0
        %372 = vmatpush2.msra.mxu0 0.0
        %373 = vmatprep.subr.mxu0 0.0
        %374 = vmatpush2.msra.mxu0 0.0
        %375 = vmatprep.subr.mxu0 0.0
        %376 = vmatpush2.msra.mxu0 0.0
        %377 = vmatprep.subr.mxu0 0.0
        %378 = vmatpush2.msra.mxu0 0.0
        %379 = vmatprep.subr.mxu0 0.0
        %380 = vmatpush2.msra.mxu0 0.0
        %381 = vmatprep.subr.mxu0 0.0
        %382 = vmatpush2.msra.mxu0 0.0
        %383 = vmatprep.subr.mxu0 0.0
        %384 = vmatpush2.msra.mxu0 0.0
        %385 = vmatprep.subr.mxu0 0.0
        %386 = vmatpush2.msra.mxu0 0.0
        %387 = vmatprep.subr.mxu0 0.0
        %388 = vmatpush2.msra.mxu0 0.0
        %389 = vmatprep.subr.mxu0 0.0
        %390 = vmatpush2.msra.mxu0 0.0
        %391 = vmatprep.subr.mxu0 0.0
        %392 = vmatpush2.msra.mxu0 0.0
        %393 = vmatprep.subr.mxu0 0.0
        %394 = vmatpush2.msra.mxu0 0.0
        %395 = vmatprep.subr.mxu0 0.0
        %396 = vmatpush2.msra.mxu0 0.0
        %397 = vmatprep.mubr.f32.mxu0 0.0
        %398 = vmatmul.mubr.f32.gmra.mxu0 %v327
        %v399 = vpop.f32.mrf.mxu0
        %v400 = vadd.f32 0.0, %v399
        %v401 = vpop.f32.mrf.mxu0
        %402 = vdwg.mxu0
        %v404 = vsel %vm325, %v305, 0
        %v406 = vsel %vm329, %v309, 0
        %408 = vmatprep.subr.mxu0 0.0
        %409 = vmatpush1.msra.mxu0 0.0
        %410 = vmatprep.subr.mxu0 0.0
        %411 = vmatpush1.msra.mxu0 0.0
        %412 = vmatprep.subr.mxu0 0.0
        %413 = vmatpush1.msra.mxu0 0.0
        %414 = vmatprep.subr.mxu0 0.0
        %415 = vmatpush1.msra.mxu0 0.0
        %416 = vmatprep.subr.mxu0 0.0
        %417 = vmatpush1.msra.mxu0 0.0
        %418 = vmatprep.subr.mxu0 0.0
        %419 = vmatpush1.msra.mxu0 0.0
        %420 = vmatprep.subr.mxu0 0.0
        %421 = vmatpush1.msra.mxu0 0.0
        %422 = vmatprep.subr.mxu0 0.0
        %423 = vmatpush1.msra.mxu0 0.0
        %424 = vmatprep.subr.mxu0 0.0
        %425 = vmatpush1.msra.mxu0 0.0
        %426 = vmatprep.subr.mxu0 0.0
        %427 = vmatpush1.msra.mxu0 0.0
        %428 = vmatprep.subr.mxu0 0.0
        %429 = vmatpush1.msra.mxu0 0.0
        %430 = vmatprep.subr.mxu0 0.0
        %431 = vmatpush1.msra.mxu0 0.0
        %432 = vmatprep.subr.mxu0 0.0
        %433 = vmatpush1.msra.mxu0 0.0
        %434 = vmatprep.subr.mxu0 0.0
        %435 = vmatpush1.msra.mxu0 0.0
        %436 = vmatprep.subr.mxu0 0.0
        %437 = vmatpush1.msra.mxu0 0.0
        %438 = vmatprep.subr.mxu0 0.0
        %439 = vmatpush1.msra.mxu0 %v406
        %440 = vmatprep.subr.mxu0 0.0
        %441 = vmatpush2.msra.mxu0 0.0
        %442 = vmatprep.subr.mxu0 0.0
        %443 = vmatpush2.msra.mxu0 0.0
        %444 = vmatprep.subr.mxu0 0.0
        %445 = vmatpush2.msra.mxu0 0.0
        %446 = vmatprep.subr.mxu0 0.0
        %447 = vmatpush2.msra.mxu0 0.0
        %448 = vmatprep.subr.mxu0 0.0
        %449 = vmatpush2.msra.mxu0 0.0
        %450 = vmatprep.subr.mxu0 0.0
        %451 = vmatpush2.msra.mxu0 0.0
        %452 = vmatprep.subr.mxu0 0.0
        %453 = vmatpush2.msra.mxu0 0.0
        %454 = vmatprep.subr.mxu0 0.0
        %455 = vmatpush2.msra.mxu0 0.0
        %456 = vmatprep.subr.mxu0 0.0
        %457 = vmatpush2.msra.mxu0 0.0
        %458 = vmatprep.subr.mxu0 0.0
        %459 = vmatpush2.msra.mxu0 0.0
        %460 = vmatprep.subr.mxu0 0.0
        %461 = vmatpush2.msra.mxu0 0.0
        %462 = vmatprep.subr.mxu0 0.0
        %463 = vmatpush2.msra.mxu0 0.0
        %464 = vmatprep.subr.mxu0 0.0
        %465 = vmatpush2.msra.mxu0 0.0
        %466 = vmatprep.subr.mxu0 0.0
        %467 = vmatpush2.msra.mxu0 0.0
        %468 = vmatprep.subr.mxu0 0.0
        %469 = vmatpush2.msra.mxu0 0.0
        %470 = vmatprep.subr.mxu0 0.0
        %471 = vmatpush2.msra.mxu0 0.0
        %472 = vmatprep.mubr.f32.mxu0 0.0
        %473 = vmatmul.mubr.f32.gmra.mxu0 %v404
        %v474 = vpop.f32.mrf.mxu0
        %v475 = vadd.f32 %v400, %v474
        %v476 = vpop.f32.mrf.mxu0
        %477 = vdwg.mxu0
        %v479 = vsel %vm325, %v307, 0
        %v482 = vsel %vm329, %v324, 0
        %484 = vmatprep.subr.mxu0 0.0
        %485 = vmatpush1.msra.mxu0 0.0
        %486 = vmatprep.subr.mxu0 0.0
        %487 = vmatpush1.msra.mxu0 0.0
        %488 = vmatprep.subr.mxu0 0.0
        %489 = vmatpush1.msra.mxu0 0.0
        %490 = vmatprep.subr.mxu0 0.0
        %491 = vmatpush1.msra.mxu0 0.0
        %492 = vmatprep.subr.mxu0 0.0
        %493 = vmatpush1.msra.mxu0 0.0
        %494 = vmatprep.subr.mxu0 0.0
        %495 = vmatpush1.msra.mxu0 0.0
        %496 = vmatprep.subr.mxu0 0.0
        %497 = vmatpush1.msra.mxu0 0.0
        %498 = vmatprep.subr.mxu0 0.0
        %499 = vmatpush1.msra.mxu0 0.0
        %500 = vmatprep.subr.mxu0 0.0
        %501 = vmatpush1.msra.mxu0 0.0
        %502 = vmatprep.subr.mxu0 0.0
        %503 = vmatpush1.msra.mxu0 0.0
        %504 = vmatprep.subr.mxu0 0.0
        %505 = vmatpush1.msra.mxu0 0.0
        %506 = vmatprep.subr.mxu0 0.0
        %507 = vmatpush1.msra.mxu0 0.0
        %508 = vmatprep.subr.mxu0 0.0
        %509 = vmatpush1.msra.mxu0 0.0
        %510 = vmatprep.subr.mxu0 0.0
        %511 = vmatpush1.msra.mxu0 0.0
        %512 = vmatprep.subr.mxu0 0.0
        %513 = vmatpush1.msra.mxu0 0.0
        %514 = vmatprep.subr.mxu0 0.0
        %515 = vmatpush1.msra.mxu0 %v482
        %516 = vmatprep.subr.mxu0 0.0
        %517 = vmatpush2.msra.mxu0 0.0
        %518 = vmatprep.subr.mxu0 0.0
        %519 = vmatpush2.msra.mxu0 0.0
        %520 = vmatprep.subr.mxu0 0.0
        %521 = vmatpush2.msra.mxu0 0.0
        %522 = vmatprep.subr.mxu0 0.0
        %523 = vmatpush2.msra.mxu0 0.0
        %524 = vmatprep.subr.mxu0 0.0
        %525 = vmatpush2.msra.mxu0 0.0
        %526 = vmatprep.subr.mxu0 0.0
        %527 = vmatpush2.msra.mxu0 0.0
        %528 = vmatprep.subr.mxu0 0.0
        %529 = vmatpush2.msra.mxu0 0.0
        %530 = vmatprep.subr.mxu0 0.0
        %531 = vmatpush2.msra.mxu0 0.0
        %532 = vmatprep.subr.mxu0 0.0
        %533 = vmatpush2.msra.mxu0 0.0
        %534 = vmatprep.subr.mxu0 0.0
        %535 = vmatpush2.msra.mxu0 0.0
        %536 = vmatprep.subr.mxu0 0.0
        %537 = vmatpush2.msra.mxu0 0.0
        %538 = vmatprep.subr.mxu0 0.0
        %539 = vmatpush2.msra.mxu0 0.0
        %540 = vmatprep.subr.mxu0 0.0
        %541 = vmatpush2.msra.mxu0 0.0
        %542 = vmatprep.subr.mxu0 0.0
        %543 = vmatpush2.msra.mxu0 0.0
        %544 = vmatprep.subr.mxu0 0.0
        %545 = vmatpush2.msra.mxu0 0.0
        %546 = vmatprep.subr.mxu0 0.0
        %547 = vmatpush2.msra.mxu0 0.0
        %548 = vmatprep.mubr.f32.mxu0 0.0
        %549 = vmatmul.mubr.f32.gmra.mxu0 %v479
        %v550 = vpop.f32.mrf.mxu0
        %v551 = vadd.f32 0.0, %v550
        %v552 = vpop.f32.mrf.mxu0
        %553 = vdwg.mxu0
        %v554 = vadd.f32 %v475, %v551
        %556 = vset.pattern.permute.xlu0 0
        %557 = vperm.xlu0 %556, %v308
        %v558 = vpop.permute.xlu0 %557
        %v560 = vadd.f32 %v554, %v558
        %vm561 = vcmask 130048
        %562 = vst.msk [vmem:[%s279] sm:$0xff] %vm561, %v560
        %s563 = sand.u32 %s167, 1
        %s564 = scalar_lea.sflag [#allocation3], %s563
        %s565 = sand.u32 %s167, 1
        %s566 = smul.addr %s565, 8
        %s567 = scalar_lea.vmem [#allocation2], %s566
        // Predicated region
        $region41: #{tpu_custom_call.1} parent=39 // pred_check
          %p568 = pneg %p177
        $region42: #{tpu_custom_call.1} parent=39 // pred_check_branch
          %570 = sbr.rel (%p568) target = $region44
        $region43: #{tpu_custom_call.1} parent=39 // pred_region
          %s572 = ssub.s32 128, 128
          %573 = vsyncadd %s564, %s572
          %s574 = sadd.s32 %s24, %s23
          %s575 = smul.addr %s574, 128
          %s576 = scalar_lea.hbm %s5, %s575
          %s578 = sshll.u32 %s567, 4
          %s579 = int_to_ptr.vmem [resolvable:$true] %s578
          %581 = dma.vmem_to_hbm [thread:$0]  %s579, 128, %s576, %s564
        $region44: #{tpu_custom_call.1} parent=39 // pred_fallthru
          _
      $region40: #{tpu_custom_call.1} parent=5 // pred_fallthru
        _
      %p582 = scmp.le.s32.totalorder 2, %s14
      // Predicated region
      $region45: #{tpu_custom_call.1} parent=5 // pred_check
        %p583 = pneg %p582
      $region46: #{tpu_custom_call.1} parent=5 // pred_check_branch
        %585 = sbr.rel (%p583) target = $region48
      $region47: #{tpu_custom_call.1} parent=5 // pred_region
        %s586 = ssub.s32 %s14, 2
        // Predicated region
        $region49: #{tpu_custom_call.1} parent=47 // pred_check
          %p587 = pneg %p183
        $region50: #{tpu_custom_call.1} parent=47 // pred_check_branch
          %589 = sbr.rel (%p587) target = $region52
        $region51: #{tpu_custom_call.1} parent=47 // pred_region
          %s590 = sand.u32 %s168, 1
          %s591 = scalar_lea.sflag [#allocation3], %s590
          %s592 = sand.u32 %s168, 1
          %s593 = smul.addr %s592, 8
          %s594 = scalar_lea.vmem [#allocation2], %s593
          %595 = dma.done %s591, 128
        $region52: #{tpu_custom_call.1} parent=47 // pred_fallthru
          _
      $region48: #{tpu_custom_call.1} parent=5 // pred_fallthru
        _
    $region6: #{tpu_custom_call.1} parent=1 // loop_footer
      %s18 = sadd.s32 1, %s14
    $region7: #{tpu_custom_call.1} parent=1 // loop_footer_branch
      %13 = sbr.rel target = $region3
    $region8: #{tpu_custom_call.1} parent=1 // loop_exit
      _
    %596 = vsyncpa [#allocation3], 1
    %s597 = scalar_lea.sflag [#allocation3], 1
    %598 = vsyncpa %s597, 1

</llo_original>
